<compile_context>
chip_gen: v7x
topology: tpu7x:2x2x1
jax: 0.10.0
libtpu: 0.0.40
codegen_flags: <defaults>
</compile_context>

<pallas_src>
import jax
import jax.numpy as jnp
from jax.experimental import pallas as pl
from jax.experimental.pallas import tpu as pltpu


def _round_up(n, m):
    return ((n + m - 1) // m) * m


def mlp_kernel(x_ref, w1_ref, c12_ref, w2_ref, w3_ref, c3_ref, o_ref):
    # layer1: Linear (+BN folded into w1 / c12[0]) + ReLU   (Dropout = identity in eval)
    h1 = jnp.dot(x_ref[...], w1_ref[...], preferred_element_type=jnp.float32)
    h1 = jnp.maximum(h1 + c12_ref[0:1, :], 0.0)

    # layer2: Linear (+BN folded into w2 / c12[1]) + ReLU
    h2 = jnp.dot(h1, w2_ref[...], preferred_element_type=jnp.float32)
    h2 = jnp.maximum(h2 + c12_ref[1:2, :], 0.0)

    # layer3: Linear
    o_ref[...] = (jnp.dot(h2, w3_ref[...], preferred_element_type=jnp.float32)
                  + c3_ref[...]).astype(o_ref.dtype)


def fold_params(params, eps=1e-5):
    """ONE-TIME prep (cache the result): fold eval-mode BatchNorm1d into the Linears.

    bn(h) = (h - mean) / sqrt(var + eps) * gamma + beta = h * s + t
    relu(bn(x @ W + b)) = relu(x @ (W * s) + (b * s + t))
    """
    (w1, b1, g1, be1, m1, v1,
     w2, b2, g2, be2, m2, v2,
     w3, b3) = params

    s1 = g1 / jnp.sqrt(v1 + eps)
    s2 = g2 / jnp.sqrt(v2 + eps)
    w1f = (w1 * s1[None, :]).astype(jnp.float32)
    w2f = (w2 * s2[None, :]).astype(jnp.float32)
    c1 = b1 * s1 + (be1 - m1 * s1)
    c2 = b2 * s2 + (be2 - m2 * s2)

    c12 = jnp.stack([c1, c2]).astype(jnp.float32)        # (2, H): one resident operand
    c3 = jnp.asarray(b3, jnp.float32).reshape(1, -1)     # (1, C)
    return (w1f, c12, w2f, jnp.asarray(w3, jnp.float32), c3)


def neural_net_forward(x, folded):
    """Hot path: fused 3-layer MLP, gridded over the batch. No per-call prep ops."""
    w1f, c12, w2f, w3, c3 = folded
    B, F = x.shape
    H = w1f.shape[1]
    C = w3.shape[1]

    # Batch tiling: one fat tile for small B (latency path); for large B cap the
    # tile at 1024 rows and force >= 2 grid steps so v7x's second TC is engaged.
    if B <= 256:
        TM = _round_up(B, 8)
    else:
        TM = min(1024, _round_up(-(-B // 2), 8))
    grid = (pl.cdiv(B, TM),)          # ragged last tile is handled; no batch pad

    resident = lambda shape: pl.BlockSpec(shape, lambda i: (0, 0))

    return pl.pallas_call(
        mlp_kernel,
        out_shape=jax.ShapeDtypeStruct((B, C), jnp.float32),
        grid=grid,
        in_specs=[
            pl.BlockSpec((TM, F), lambda i: (i, 0)),   # x streams over the batch (F=51 unpadded)
            resident((F, H)),                          # fused layer1 weight
            resident((2, H)),                          # packed fused biases (layer1, layer2)
            resident((H, H)),                          # fused layer2 weight
            resident((H, C)),                          # layer3 weight (C=6 unpadded)
            resident((1, C)),                          # layer3 bias
        ],
        out_specs=pl.BlockSpec((TM, C), lambda i: (i, 0)),
        compiler_params=pltpu.CompilerParams(
            dimension_semantics=("parallel",)),        # shard batch axis across TCs on v7x
    )(x, w1f, c12, w2f, w3, c3)


def init_params(key, input_size, hidden_size, num_classes):
    ks = jax.random.split(key, 8)

    def linear(k, fan_in, fan_out):
        bound = 1.0 / jnp.sqrt(fan_in)
        kw, kb = jax.random.split(k)
        # stored as [in, out] (transposed relative to torch's [out, in])
        w = jax.random.uniform(kw, (fan_in, fan_out), jnp.float32, -bound, bound)
        b = jax.random.uniform(kb, (fan_out,), jnp.float32, -bound, bound)
        return w, b

    w1, b1 = linear(ks[0], input_size, hidden_size)
    w2, b2 = linear(ks[1], hidden_size, hidden_size)
    w3, b3 = linear(ks[2], hidden_size, num_classes)

    # BatchNorm1d params + running stats (eval mode), deterministic & non-trivial.
    g1 = 1.0 + 0.1 * jax.random.normal(ks[3], (hidden_size,), jnp.float32)
    be1 = 0.1 * jax.random.normal(ks[4], (hidden_size,), jnp.float32)
    m1 = 0.05 * jax.random.normal(ks[5], (hidden_size,), jnp.float32)
    v1 = 1.0 + 0.1 * jnp.abs(jax.random.normal(ks[6], (hidden_size,), jnp.float32))

    k2 = jax.random.split(ks[7], 4)
    g2 = 1.0 + 0.1 * jax.random.normal(k2[0], (hidden_size,), jnp.float32)
    be2 = 0.1 * jax.random.normal(k2[1], (hidden_size,), jnp.float32)
    m2 = 0.05 * jax.random.normal(k2[2], (hidden_size,), jnp.float32)
    v2 = 1.0 + 0.1 * jnp.abs(jax.random.normal(k2[3], (hidden_size,), jnp.float32))

    return (w1, b1, g1, be1, m1, v1,
            w2, b2, g2, be2, m2, v2,
            w3, b3)


def reference_forward(x, params):
    """Plain-JAX reference (matches PyTorch eval-mode forward)."""
    (w1, b1, g1, be1, m1, v1,
     w2, b2, g2, be2, m2, v2,
     w3, b3) = params
    eps = 1e-5
    h = x @ w1 + b1
    h = (h - m1) / jnp.sqrt(v1 + eps) * g1 + be1
    h = jnp.maximum(h, 0.0)
    h = h @ w2 + b2
    h = (h - m2) / jnp.sqrt(v2 + eps) * g2 + be2
    h = jnp.maximum(h, 0.0)
    return h @ w3 + b3


if __name__ == "__main__":
    input_size = 51      # fixed by the original script
    hidden_size = 32
    num_classes = 6
    batch = 8

    key = jax.random.PRNGKey(0)
    kx, kp = jax.random.split(key)
    x = jax.random.normal(kx, (batch, input_size), jnp.float32)
    params = init_params(kp, input_size, hidden_size, num_classes)

    # One-time prep; these folded operands are what gets cached across calls.
    folded = fold_params(params)
    fwd = jax.jit(neural_net_forward)

    # Small-batch latency path (single grid step).
    out = jax.block_until_ready(fwd(x, folded))
    ref = reference_forward(x, params)
    assert out.shape == (batch, num_classes)
    assert jnp.allclose(out, ref, atol=1e-4, rtol=1e-4), "mismatch vs reference (B=8)"

    # Large-batch path: multi-step 'parallel' grid + ragged last tile (no batch pad).
    B2 = 333
    x2 = jax.random.normal(jax.random.PRNGKey(1), (B2, input_size), jnp.float32)
    out2 = jax.block_until_ready(fwd(x2, folded))
    ref2 = reference_forward(x2, params)
    assert out2.shape == (B2, num_classes)
    assert jnp.allclose(out2, ref2, atol=1e-4, rtol=1e-4), "mismatch vs reference (B=333)"

    print("KERNEL_OK")
</pallas_src>

<mosaic_0001>
module attributes {stable_mosaic.version = 11 : i64} {
  func.func @mlp_kernel(%arg0: i32, %arg1: memref<8x51xf32, #tpu.memory_space<vmem>>, %arg2: memref<51x32xf32, #tpu.memory_space<vmem>>, %arg3: memref<2x32xf32, #tpu.memory_space<vmem>>, %arg4: memref<32x32xf32, #tpu.memory_space<vmem>>, %arg5: memref<32x6xf32, #tpu.memory_space<vmem>>, %arg6: memref<1x6xf32, #tpu.memory_space<vmem>>, %arg7: memref<8x6xf32, #tpu.memory_space<vmem>>) attributes {dimension_semantics = [#tpu.dimension_semantics<parallel>], iteration_bounds = array<i64: 1>, scalar_prefetch = 0 : i64, scratch_operands = 0 : i64, tpu.core_type = #tpu.core_type<tc>, window_params = [{transform_indices = @transform_0, window_bounds = array<i64: 8, 51>}, {pipeline_mode = #tpu.pipeline_mode<synchronous>, transform_indices = @transform_1, window_bounds = array<i64: 51, 32>}, {pipeline_mode = #tpu.pipeline_mode<synchronous>, transform_indices = @transform_2, window_bounds = array<i64: 2, 32>}, {pipeline_mode = #tpu.pipeline_mode<synchronous>, transform_indices = @transform_3, window_bounds = array<i64: 32, 32>}, {pipeline_mode = #tpu.pipeline_mode<synchronous>, transform_indices = @transform_4, window_bounds = array<i64: 32, 6>}, {pipeline_mode = #tpu.pipeline_mode<synchronous>, transform_indices = @transform_5, window_bounds = array<i64: 1, 6>}, {transform_indices = @transform_6, window_bounds = array<i64: 8, 6>}]} {
    %c0 = arith.constant 0 : index
    %c0_0 = arith.constant 0 : index
    %0 = vector.load %arg1[%c0, %c0_0] : memref<8x51xf32, #tpu.memory_space<vmem>>, vector<8x51xf32>
    %c0_1 = arith.constant 0 : index
    %c0_2 = arith.constant 0 : index
    %1 = vector.load %arg2[%c0_1, %c0_2] : memref<51x32xf32, #tpu.memory_space<vmem>>, vector<51x32xf32>
    %cst = arith.constant dense<0.000000e+00> : vector<8x32xf32>
    %2 = tpu.matmul %0, %1, %cst {dimension_numbers = #tpu.dot_dimension_numbers<[1], [0], [0], [1], [0, 0, 1, 1], [], []>} : vector<8x51xf32>, vector<51x32xf32>, vector<8x32xf32> -> vector<8x32xf32>
    %c0_3 = arith.constant 0 : index
    %c0_4 = arith.constant 0 : index
    %3 = vector.load %arg3[%c0_3, %c0_4] : memref<2x32xf32, #tpu.memory_space<vmem>>, vector<1x32xf32>
    %4 = vector.broadcast %3 : vector<1x32xf32> to vector<8x32xf32>
    %5 = arith.addf %2, %4 : vector<8x32xf32>
    %cst_5 = arith.constant 0.000000e+00 : f32
    %6 = vector.broadcast %cst_5 : f32 to vector<8x32xf32>
    %7 = arith.maximumf %5, %6 : vector<8x32xf32>
    %c0_6 = arith.constant 0 : index
    %c0_7 = arith.constant 0 : index
    %8 = vector.load %arg4[%c0_6, %c0_7] : memref<32x32xf32, #tpu.memory_space<vmem>>, vector<32x32xf32>
    %cst_8 = arith.constant dense<0.000000e+00> : vector<8x32xf32>
    %9 = tpu.matmul %7, %8, %cst_8 {dimension_numbers = #tpu.dot_dimension_numbers<[1], [0], [0], [1], [0, 0, 1, 1], [], []>} : vector<8x32xf32>, vector<32x32xf32>, vector<8x32xf32> -> vector<8x32xf32>
    %c1 = arith.constant 1 : index
    %c0_9 = arith.constant 0 : index
    %10 = vector.load %arg3[%c1, %c0_9] : memref<2x32xf32, #tpu.memory_space<vmem>>, vector<1x32xf32>
    %11 = vector.broadcast %10 : vector<1x32xf32> to vector<8x32xf32>
    %12 = arith.addf %9, %11 : vector<8x32xf32>
    %cst_10 = arith.constant 0.000000e+00 : f32
    %13 = vector.broadcast %cst_10 : f32 to vector<8x32xf32>
    %14 = arith.maximumf %12, %13 : vector<8x32xf32>
    %c0_11 = arith.constant 0 : index
    %c0_12 = arith.constant 0 : index
    %15 = vector.load %arg5[%c0_11, %c0_12] : memref<32x6xf32, #tpu.memory_space<vmem>>, vector<32x6xf32>
    %cst_13 = arith.constant dense<0.000000e+00> : vector<8x6xf32>
    %16 = tpu.matmul %14, %15, %cst_13 {dimension_numbers = #tpu.dot_dimension_numbers<[1], [0], [0], [1], [0, 0, 1, 1], [], []>} : vector<8x32xf32>, vector<32x6xf32>, vector<8x6xf32> -> vector<8x6xf32>
    %c0_14 = arith.constant 0 : index
    %c0_15 = arith.constant 0 : index
    %17 = vector.load %arg6[%c0_14, %c0_15] : memref<1x6xf32, #tpu.memory_space<vmem>>, vector<1x6xf32>
    %18 = vector.broadcast %17 : vector<1x6xf32> to vector<8x6xf32>
    %19 = arith.addf %16, %18 : vector<8x6xf32>
    %c0_16 = arith.constant 0 : index
    %c0_17 = arith.constant 0 : index
    %20 = vector.load %arg7[%c0_16, %c0_17] : memref<8x6xf32, #tpu.memory_space<vmem>>, vector<8x6xf32>
    tpu.vector_store %arg7[%c0_16, %c0_17], %19 {strides = array<i32>} : memref<8x6xf32, #tpu.memory_space<vmem>>, vector<8x6xf32>,
    return
  }
  func.func @transform_0(%arg0: i32) -> (i32, i32) {
    %c0_i32 = arith.constant 0 : i32
    %c0_i32_0 = arith.constant 0 : i32
    return %arg0, %c0_i32 : i32, i32
  }
  func.func @transform_1(%arg0: i32) -> (i32, i32) {
    %c0_i32 = arith.constant 0 : i32
    %c0_i32_0 = arith.constant 0 : i32
    %c0_i32_1 = arith.constant 0 : i32
    return %c0_i32, %c0_i32_0 : i32, i32
  }
  func.func @transform_2(%arg0: i32) -> (i32, i32) {
    %c0_i32 = arith.constant 0 : i32
    %c0_i32_0 = arith.constant 0 : i32
    %c0_i32_1 = arith.constant 0 : i32
    return %c0_i32, %c0_i32_0 : i32, i32
  }
  func.func @transform_3(%arg0: i32) -> (i32, i32) {
    %c0_i32 = arith.constant 0 : i32
    %c0_i32_0 = arith.constant 0 : i32
    %c0_i32_1 = arith.constant 0 : i32
    return %c0_i32, %c0_i32_0 : i32, i32
  }
  func.func @transform_4(%arg0: i32) -> (i32, i32) {
    %c0_i32 = arith.constant 0 : i32
    %c0_i32_0 = arith.constant 0 : i32
    %c0_i32_1 = arith.constant 0 : i32
    return %c0_i32, %c0_i32_0 : i32, i32
  }
  func.func @transform_5(%arg0: i32) -> (i32, i32) {
    %c0_i32 = arith.constant 0 : i32
    %c0_i32_0 = arith.constant 0 : i32
    %c0_i32_1 = arith.constant 0 : i32
    return %c0_i32, %c0_i32_0 : i32, i32
  }
  func.func @transform_6(%arg0: i32) -> (i32, i32) {
    %c0_i32 = arith.constant 0 : i32
    %c0_i32_0 = arith.constant 0 : i32
    return %arg0, %c0_i32 : i32, i32
  }
}

</mosaic_0001>

<llo_original>
// kernel: neural_net_forward.1
$region0: #{neural_net_forward.1}
  #allocation0 [shape = 'u32[]', space=smem, size = 0x4, offset = 0x4, fixed_abs, tag = 'smem constant byte address 0x4 - core index']
  #allocation1 [shape = 'u32[144,128]{1,0:T(1,128)}', space=vmem, size = 0x12000, scoped, tag = 'internal scratch']
  %s0 = inlined_call_operand.vmem [shape: f32[8,51], index: 0, kind: input, shape index: {}]
  %s1 = inlined_call_operand.vmem [shape: f32[51,32], index: 1, kind: input, shape index: {}]
  %s2 = inlined_call_operand.vmem [shape: f32[2,32], index: 2, kind: input, shape index: {}]
  %s3 = inlined_call_operand.vmem [shape: f32[32,32], index: 3, kind: input, shape index: {}]
  %s4 = inlined_call_operand.vmem [shape: f32[32,6], index: 4, kind: input, shape index: {}]
  %s5 = inlined_call_operand.vmem [shape: f32[1,6], index: 5, kind: input, shape index: {}]
  %s6 = inlined_call_operand.hbm [shape: f32[8,6], index: 6, kind: output, shape index: {}]
  %s7 = sld [smem:[#allocation0]]
  $region34: #{neural_net_forward.1} parent=0
    _
  %s9 = ssub.s32 1, %s7
  %s10 = scalar_select 0, %s9, %s7
  $region1: #{neural_net_forward.1} parent=0
    #allocation2 [shape = 'u8[4096]{0}', space=vmem, size = 0x1000, scoped, tag = 'output window, operand 0, single buffered']
    #allocation3 [shape = 's32[1]{0}', space=sflag, size = 0x4, scoped, tag = 'scoped memory for neural_net_forward.1']
    %11 = vsyncpa [#allocation3], 0
    // Predicated region
    $region2: #{neural_net_forward.1} parent=1 // pred_check
      _
    $region3: #{neural_net_forward.1} parent=1 // pred_check_branch
      %13 = sbr.rel (0) target = $region5
    $region4: #{neural_net_forward.1} parent=1 // pred_region
      _
    $region5: #{neural_net_forward.1} parent=1 // pred_fallthru
      _
    // Predicated region
    $region6: #{neural_net_forward.1} parent=1 // pred_check
      _
    $region7: #{neural_net_forward.1} parent=1 // pred_check_branch
      %15 = sbr.rel (0) target = $region9
    $region8: #{neural_net_forward.1} parent=1 // pred_region
      _
    $region9: #{neural_net_forward.1} parent=1 // pred_fallthru
      _
    // Predicated region
    $region10: #{neural_net_forward.1} parent=1 // pred_check
      _
    $region11: #{neural_net_forward.1} parent=1 // pred_check_branch
      %17 = sbr.rel (0) target = $region13
    $region12: #{neural_net_forward.1} parent=1 // pred_region
      _
    $region13: #{neural_net_forward.1} parent=1 // pred_fallthru
      _
    // Predicated region
    $region14: #{neural_net_forward.1} parent=1 // pred_check
      _
    $region15: #{neural_net_forward.1} parent=1 // pred_check_branch
      %19 = sbr.rel (0) target = $region17
    $region16: #{neural_net_forward.1} parent=1 // pred_region
      _
    $region17: #{neural_net_forward.1} parent=1 // pred_fallthru
      _
    // Predicated region
    $region18: #{neural_net_forward.1} parent=1 // pred_check
      _
    $region19: #{neural_net_forward.1} parent=1 // pred_check_branch
      %21 = sbr.rel (0) target = $region21
    $region20: #{neural_net_forward.1} parent=1 // pred_region
      _
    $region21: #{neural_net_forward.1} parent=1 // pred_fallthru
      _
    // Predicated region
    $region22: #{neural_net_forward.1} parent=1 // pred_check
      _
    $region23: #{neural_net_forward.1} parent=1 // pred_check_branch
      %23 = sbr.rel (0) target = $region25
    $region24: #{neural_net_forward.1} parent=1 // pred_region
      _
    $region25: #{neural_net_forward.1} parent=1 // pred_fallthru
      _
    %v24 = vld [vmem:[%s0] sm:$0xff]
    %v25 = vld [vmem:[%s1] sm:$0xff]
    %v26 = vld [vmem:[%s1 + $0x8] sm:$0xff]
    %v27 = vld [vmem:[%s1 + $0x10] sm:$0xff]
    %v28 = vld [vmem:[%s1 + $0x18] sm:$0xff]
    %v29 = vld [vmem:[%s1 + $0x20] sm:$0xff]
    %v30 = vld [vmem:[%s1 + $0x28] sm:$0xff]
    %v31 = vld [vmem:[%s1 + $0x30] sm:$0x7]
    %v32 = vld [vmem:[%s2] sm:$0x1]
    %v33 = vlaneseq
    %v34 = vshrl.u32 %v33, 7
    %v35 = vsub.s32 0, %v34
    %v36 = vrot.slane %v32, %v35
    %vm37 = vcmask 416768
    %v39 = vsel %vm37, %v24, 0
    %vm41 = vcmask 1042432
    %v43 = vsel %vm41, %v31, 0
    %45 = vmatprep.subr.mxu0 0.0
    %46 = vmatpush1.msra.mxu0 %v25
    %47 = vmatprep.subr.mxu0 0.0
    %48 = vmatpush1.msra.mxu0 %v26
    %49 = vmatprep.subr.mxu0 0.0
    %50 = vmatpush1.msra.mxu0 %v27
    %51 = vmatprep.subr.mxu0 0.0
    %52 = vmatpush1.msra.mxu0 %v28
    %53 = vmatprep.subr.mxu0 0.0
    %54 = vmatpush1.msra.mxu0 %v29
    %55 = vmatprep.subr.mxu0 0.0
    %56 = vmatpush1.msra.mxu0 %v30
    %57 = vmatprep.subr.mxu0 0.0
    %58 = vmatpush1.msra.mxu0 %v43
    %59 = vmatprep.subr.mxu0 0.0
    %60 = vmatpush1.msra.mxu0 0.0
    %61 = vmatprep.subr.mxu0 0.0
    %62 = vmatpush1.msra.mxu0 0.0
    %63 = vmatprep.subr.mxu0 0.0
    %64 = vmatpush1.msra.mxu0 0.0
    %65 = vmatprep.subr.mxu0 0.0
    %66 = vmatpush1.msra.mxu0 0.0
    %67 = vmatprep.subr.mxu0 0.0
    %68 = vmatpush1.msra.mxu0 0.0
    %69 = vmatprep.subr.mxu0 0.0
    %70 = vmatpush1.msra.mxu0 0.0
    %71 = vmatprep.subr.mxu0 0.0
    %72 = vmatpush1.msra.mxu0 0.0
    %73 = vmatprep.subr.mxu0 0.0
    %74 = vmatpush1.msra.mxu0 0.0
    %75 = vmatprep.subr.mxu0 0.0
    %76 = vmatpush1.msra.mxu0 0.0
    %77 = vmatprep.subr.mxu0 0.0
    %78 = vmatpush1.msra.mxu0 0.0
    %79 = vmatprep.subr.mxu0 0.0
    %80 = vmatpush1.msra.mxu0 0.0
    %81 = vmatprep.subr.mxu0 0.0
    %82 = vmatpush1.msra.mxu0 0.0
    %83 = vmatprep.subr.mxu0 0.0
    %84 = vmatpush1.msra.mxu0 0.0
    %85 = vmatprep.subr.mxu0 0.0
    %86 = vmatpush1.msra.mxu0 0.0
    %87 = vmatprep.subr.mxu0 0.0
    %88 = vmatpush1.msra.mxu0 0.0
    %89 = vmatprep.subr.mxu0 0.0
    %90 = vmatpush1.msra.mxu0 0.0
    %91 = vmatprep.subr.mxu0 0.0
    %92 = vmatpush1.msra.mxu0 0.0
    %93 = vmatprep.subr.mxu0 0.0
    %94 = vmatpush1.msra.mxu0 0.0
    %95 = vmatprep.subr.mxu0 0.0
    %96 = vmatpush1.msra.mxu0 0.0
    %97 = vmatprep.subr.mxu0 0.0
    %98 = vmatpush1.msra.mxu0 0.0
    %99 = vmatprep.subr.mxu0 0.0
    %100 = vmatpush1.msra.mxu0 0.0
    %101 = vmatprep.subr.mxu0 0.0
    %102 = vmatpush1.msra.mxu0 0.0
    %103 = vmatprep.subr.mxu0 0.0
    %104 = vmatpush1.msra.mxu0 0.0
    %105 = vmatprep.subr.mxu0 0.0
    %106 = vmatpush1.msra.mxu0 0.0
    %107 = vmatprep.subr.mxu0 0.0
    %108 = vmatpush1.msra.mxu0 0.0
    %109 = vmatprep.mubr.f32.mxu0 0.0
    %110 = vmatmul.mubr.f32.gmra.mrb[0].mxu0 %v39
    %v111 = vpop.f32.mrb[0].mxu0
    %v112 = vadd.f32 %v36, %v111
    %v113 = vpop.f32.mrb[0].mxu0
    %114 = vdwg.mxu0
    %v115 = vmax.f32 %v112, 0.0
    %v116 = vld [vmem:[%s3] sm:$0xff]
    %v117 = vld [vmem:[%s3 + $0x8] sm:$0xff]
    %v118 = vld [vmem:[%s3 + $0x10] sm:$0xff]
    %v119 = vld [vmem:[%s3 + $0x18] sm:$0xff]
    %v120 = vld [vmem:[%s2 + $0x1] sm:$0x1]
    %v121 = vlaneseq
    %v122 = vshrl.u32 %v121, 7
    %v123 = vsub.s32 0, %v122
    %v124 = vrot.slane %v120, %v123
    %vm125 = vcmask 261120
    %v127 = vsel %vm125, %v115, 0
    %129 = vmatprep.subr.mxu0 0.0
    %130 = vmatpush1.msra.mxu0 %v116
    %131 = vmatprep.subr.mxu0 0.0
    %132 = vmatpush1.msra.mxu0 %v117
    %133 = vmatprep.subr.mxu0 0.0
    %134 = vmatpush1.msra.mxu0 %v118
    %135 = vmatprep.subr.mxu0 0.0
    %136 = vmatpush1.msra.mxu0 %v119
    %137 = vmatprep.subr.mxu0 0.0
    %138 = vmatpush1.msra.mxu0 0.0
    %139 = vmatprep.subr.mxu0 0.0
    %140 = vmatpush1.msra.mxu0 0.0
    %141 = vmatprep.subr.mxu0 0.0
    %142 = vmatpush1.msra.mxu0 0.0
    %143 = vmatprep.subr.mxu0 0.0
    %144 = vmatpush1.msra.mxu0 0.0
    %145 = vmatprep.subr.mxu0 0.0
    %146 = vmatpush1.msra.mxu0 0.0
    %147 = vmatprep.subr.mxu0 0.0
    %148 = vmatpush1.msra.mxu0 0.0
    %149 = vmatprep.subr.mxu0 0.0
    %150 = vmatpush1.msra.mxu0 0.0
    %151 = vmatprep.subr.mxu0 0.0
    %152 = vmatpush1.msra.mxu0 0.0
    %153 = vmatprep.subr.mxu0 0.0
    %154 = vmatpush1.msra.mxu0 0.0
    %155 = vmatprep.subr.mxu0 0.0
    %156 = vmatpush1.msra.mxu0 0.0
    %157 = vmatprep.subr.mxu0 0.0
    %158 = vmatpush1.msra.mxu0 0.0
    %159 = vmatprep.subr.mxu0 0.0
    %160 = vmatpush1.msra.mxu0 0.0
    %161 = vmatprep.subr.mxu0 0.0
    %162 = vmatpush1.msra.mxu0 0.0
    %163 = vmatprep.subr.mxu0 0.0
    %164 = vmatpush1.msra.mxu0 0.0
    %165 = vmatprep.subr.mxu0 0.0
    %166 = vmatpush1.msra.mxu0 0.0
    %167 = vmatprep.subr.mxu0 0.0
    %168 = vmatpush1.msra.mxu0 0.0
    %169 = vmatprep.subr.mxu0 0.0
    %170 = vmatpush1.msra.mxu0 0.0
    %171 = vmatprep.subr.mxu0 0.0
    %172 = vmatpush1.msra.mxu0 0.0
    %173 = vmatprep.subr.mxu0 0.0
    %174 = vmatpush1.msra.mxu0 0.0
    %175 = vmatprep.subr.mxu0 0.0
    %176 = vmatpush1.msra.mxu0 0.0
    %177 = vmatprep.subr.mxu0 0.0
    %178 = vmatpush1.msra.mxu0 0.0
    %179 = vmatprep.subr.mxu0 0.0
    %180 = vmatpush1.msra.mxu0 0.0
    %181 = vmatprep.subr.mxu0 0.0
    %182 = vmatpush1.msra.mxu0 0.0
    %183 = vmatprep.subr.mxu0 0.0
    %184 = vmatpush1.msra.mxu0 0.0
    %185 = vmatprep.subr.mxu0 0.0
    %186 = vmatpush1.msra.mxu0 0.0
    %187 = vmatprep.subr.mxu0 0.0
    %188 = vmatpush1.msra.mxu0 0.0
    %189 = vmatprep.subr.mxu0 0.0
    %190 = vmatpush1.msra.mxu0 0.0
    %191 = vmatprep.subr.mxu0 0.0
    %192 = vmatpush1.msra.mxu0 0.0
    %193 = vmatprep.mubr.f32.mxu0 0.0
    %194 = vmatmul.mubr.f32.gmra.mrb[0].mxu0 %v127
    %v195 = vpop.f32.mrb[0].mxu0
    %v196 = vadd.f32 %v124, %v195
    %v197 = vpop.f32.mrb[0].mxu0
    %198 = vdwg.mxu0
    %v199 = vmax.f32 %v196, 0.0
    %v200 = vld [vmem:[%s4] sm:$0xff]
    %v201 = vld [vmem:[%s4 + $0x8] sm:$0xff]
    %v202 = vld [vmem:[%s4 + $0x10] sm:$0xff]
    %v203 = vld [vmem:[%s4 + $0x18] sm:$0xff]
    %v204 = vld [vmem:[%s5] sm:$0x1]
    %v206 = vlaneseq
    %v207 = vshrl.u32 %v206, 7
    %v208 = vsub.s32 0, %v207
    %v209 = vrot.slane %v204, %v208
    %v212 = vsel %vm125, %v199, 0
    %214 = vmatprep.subr.mxu0 0.0
    %215 = vmatpush1.msra.mxu0 %v200
    %216 = vmatprep.subr.mxu0 0.0
    %217 = vmatpush1.msra.mxu0 %v201
    %218 = vmatprep.subr.mxu0 0.0
    %219 = vmatpush1.msra.mxu0 %v202
    %220 = vmatprep.subr.mxu0 0.0
    %221 = vmatpush1.msra.mxu0 %v203
    %222 = vmatprep.subr.mxu0 0.0
    %223 = vmatpush1.msra.mxu0 0.0
    %224 = vmatprep.subr.mxu0 0.0
    %225 = vmatpush1.msra.mxu0 0.0
    %226 = vmatprep.subr.mxu0 0.0
    %227 = vmatpush1.msra.mxu0 0.0
    %228 = vmatprep.subr.mxu0 0.0
    %229 = vmatpush1.msra.mxu0 0.0
    %230 = vmatprep.subr.mxu0 0.0
    %231 = vmatpush1.msra.mxu0 0.0
    %232 = vmatprep.subr.mxu0 0.0
    %233 = vmatpush1.msra.mxu0 0.0
    %234 = vmatprep.subr.mxu0 0.0
    %235 = vmatpush1.msra.mxu0 0.0
    %236 = vmatprep.subr.mxu0 0.0
    %237 = vmatpush1.msra.mxu0 0.0
    %238 = vmatprep.subr.mxu0 0.0
    %239 = vmatpush1.msra.mxu0 0.0
    %240 = vmatprep.subr.mxu0 0.0
    %241 = vmatpush1.msra.mxu0 0.0
    %242 = vmatprep.subr.mxu0 0.0
    %243 = vmatpush1.msra.mxu0 0.0
    %244 = vmatprep.subr.mxu0 0.0
    %245 = vmatpush1.msra.mxu0 0.0
    %246 = vmatprep.subr.mxu0 0.0
    %247 = vmatpush1.msra.mxu0 0.0
    %248 = vmatprep.subr.mxu0 0.0
    %249 = vmatpush1.msra.mxu0 0.0
    %250 = vmatprep.subr.mxu0 0.0
    %251 = vmatpush1.msra.mxu0 0.0
    %252 = vmatprep.subr.mxu0 0.0
    %253 = vmatpush1.msra.mxu0 0.0
    %254 = vmatprep.subr.mxu0 0.0
    %255 = vmatpush1.msra.mxu0 0.0
    %256 = vmatprep.subr.mxu0 0.0
    %257 = vmatpush1.msra.mxu0 0.0
    %258 = vmatprep.subr.mxu0 0.0
    %259 = vmatpush1.msra.mxu0 0.0
    %260 = vmatprep.subr.mxu0 0.0
    %261 = vmatpush1.msra.mxu0 0.0
    %262 = vmatprep.subr.mxu0 0.0
    %263 = vmatpush1.msra.mxu0 0.0
    %264 = vmatprep.subr.mxu0 0.0
    %265 = vmatpush1.msra.mxu0 0.0
    %266 = vmatprep.subr.mxu0 0.0
    %267 = vmatpush1.msra.mxu0 0.0
    %268 = vmatprep.subr.mxu0 0.0
    %269 = vmatpush1.msra.mxu0 0.0
    %270 = vmatprep.subr.mxu0 0.0
    %271 = vmatpush1.msra.mxu0 0.0
    %272 = vmatprep.subr.mxu0 0.0
    %273 = vmatpush1.msra.mxu0 0.0
    %274 = vmatprep.subr.mxu0 0.0
    %275 = vmatpush1.msra.mxu0 0.0
    %276 = vmatprep.subr.mxu0 0.0
    %277 = vmatpush1.msra.mxu0 0.0
    %278 = vmatprep.mubr.f32.mxu0 0.0
    %279 = vmatmul.mubr.f32.gmra.mrb[0].mxu0 %v212
    %v280 = vpop.f32.mrb[0].mxu0
    %v281 = vadd.f32 %v209, %v280
    %v282 = vpop.f32.mrb[0].mxu0
    %283 = vdwg.mxu0
    %vm284 = vcmask 48128
    %285 = vst.msk [vmem:[#allocation2] sm:$0xff] %vm284, %v281
    // Predicated region
    $region26: #{neural_net_forward.1} parent=1 // pred_check
      _
    $region27: #{neural_net_forward.1} parent=1 // pred_check_branch
      %287 = sbr.rel (0) target = $region29
    $region28: #{neural_net_forward.1} parent=1 // pred_region
      %s289 = ssub.s32 128, 128
      %290 = vsyncadd [#allocation3], %s289
      %s292 = sshll.u32 [#allocation2], 4
      %s293 = int_to_ptr.vmem [resolvable:$true] %s292
      %295 = dma.vmem_to_hbm [thread:$0]  %s293, 128, %s6, [#allocation3]
    $region29: #{neural_net_forward.1} parent=1 // pred_fallthru
      _
    // Predicated region
    $region30: #{neural_net_forward.1} parent=1 // pred_check
      _
    $region31: #{neural_net_forward.1} parent=1 // pred_check_branch
      %297 = sbr.rel (0) target = $region33
    $region32: #{neural_net_forward.1} parent=1 // pred_region
      %298 = dma.done [#allocation3], 128
    $region33: #{neural_net_forward.1} parent=1 // pred_fallthru
      _
    %299 = vsyncpa [#allocation3], 1

</llo_original>
